<compile_context>
chip_gen: v6e
topology: v6e:2x2x1
jax: 0.10.0
libtpu: 0.0.40
codegen_flags: <defaults>
</compile_context>

<pallas_src>
import functools

import jax
import jax.numpy as jnp
import numpy as np
from jax import lax
from jax.experimental import pallas as pl
from jax.experimental.pallas import tpu as pltpu


_VMEM_LIMIT_BYTES = 32 * 1024 * 1024   # safe scoped-VMEM budget on v5e/v6e/v7x
_ROW_TILE_CAP = 256                    # rows per grid step (multiple of 8)


def _compiler_params(semantics):
    return pltpu.CompilerParams(dimension_semantics=semantics,
                                vmem_limit_bytes=_VMEM_LIMIT_BYTES)


def _choose_row_tile(n):
    # If the array fits in one tile, use the full extent (always a legal block);
    # otherwise a fixed multiple-of-8 tile with in-kernel masking of the tail.
    return n if n <= _ROW_TILE_CAP else _ROW_TILE_CAP


# ----------------------------------------------------------------------------
# GraphNorm kernels (3 tiled passes over x: mean, var->coeffs, apply)
# ----------------------------------------------------------------------------

def _gn_mean_kernel(n_rows, x_ref, seg_ref, invc_ref, mean_ref, acc_ref):
    """Accumulate per-graph sums of x; finalize mean_g = sum_g / count_g."""
    i = pl.program_id(0)
    nt = pl.num_programs(0)

    @pl.when(i == 0)
    def _():
        acc_ref[...] = jnp.zeros_like(acc_ref)

    tile_n = x_ref.shape[0]
    b_pad = acc_ref.shape[0]
    row = lax.broadcasted_iota(jnp.int32, (tile_n, 1), 0) + i * tile_n
    valid = row < n_rows                                        # mask tail tile
    x = jnp.where(valid, x_ref[...].astype(jnp.float32), 0.0)
    gid = lax.broadcasted_iota(jnp.int32, (tile_n, b_pad), 1)
    onehot = (valid & (seg_ref[...] == gid)).astype(jnp.float32)  # (tile_n, B_pad)

    # segment-sum via a tiny in-register one-hot matmul (contract node dim)
    acc_ref[...] += lax.dot_general(onehot, x, (((0,), (0,)), ((), ())),
                                    preferred_element_type=jnp.float32)

    @pl.when(i == nt - 1)
    def _():
        mean_ref[...] = acc_ref[...] * invc_ref[...]


def _gn_var_kernel(n_rows, x_ref, seg_ref, mean_ref, invc_ref, w_ref, ms_ref,
                   bias_ref, a_ref, c_ref, acc_ref):
    """Accumulate per-graph sum((x - ms*mean)^2); finalize fused affine coeffs:
       A_g = w * rsqrt(var_g + 1e-6),  C_g = b - ms * mean_g * A_g."""
    i = pl.program_id(0)
    nt = pl.num_programs(0)

    @pl.when(i == 0)
    def _():
        acc_ref[...] = jnp.zeros_like(acc_ref)

    tile_n = x_ref.shape[0]
    b_pad = acc_ref.shape[0]
    row = lax.broadcasted_iota(jnp.int32, (tile_n, 1), 0) + i * tile_n
    valid = row < n_rows
    x = jnp.where(valid, x_ref[...].astype(jnp.float32), 0.0)
    gid = lax.broadcasted_iota(jnp.int32, (tile_n, b_pad), 1)
    onehot = (valid & (seg_ref[...] == gid)).astype(jnp.float32)

    mean_n = jnp.dot(onehot, mean_ref[...], preferred_element_type=jnp.float32)
    sub = x - mean_n * ms_ref[...]
    acc_ref[...] += lax.dot_general(onehot, sub * sub, (((0,), (0,)), ((), ())),
                                    preferred_element_type=jnp.float32)

    @pl.when(i == nt - 1)
    def _():
        var_g = acc_ref[...] * invc_ref[...]
        a = w_ref[...] * lax.rsqrt(var_g + 1e-6)      # EUP rsqrt at (B, D)
        a_ref[...] = a
        c_ref[...] = bias_ref[...] - ms_ref[...] * mean_ref[...] * a


def _gn_apply_kernel(x_ref, seg_ref, a_ref, c_ref, o_ref):
    """out = x * A[seg] + C[seg] — single FMA per element, fully parallel tiles."""
    tile_n = x_ref.shape[0]
    b_pad = a_ref.shape[0]
    gid = lax.broadcasted_iota(jnp.int32, (tile_n, b_pad), 1)
    onehot = (seg_ref[...] == gid).astype(jnp.float32)
    a_n = jnp.dot(onehot, a_ref[...], preferred_element_type=jnp.float32)
    c_n = jnp.dot(onehot, c_ref[...], preferred_element_type=jnp.float32)
    o_ref[...] = (x_ref[...].astype(jnp.float32) * a_n + c_n).astype(o_ref.dtype)


def graphnorm_forward(x, seg_ids, inv_counts, weight, mean_scale, bias):
    n, d = x.shape
    b_pad = inv_counts.shape[0]
    tile_n = _choose_row_tile(n)
    grid = (pl.cdiv(n, tile_n),)

    x_spec = pl.BlockSpec((tile_n, d), lambda i: (i, 0))
    seg_spec = pl.BlockSpec((tile_n, 1), lambda i: (i, 0))

    def const(shape):
        return pl.BlockSpec(shape, lambda i: (0, 0))   # VMEM-resident across grid

    mean_g = pl.pallas_call(
        functools.partial(_gn_mean_kernel, n),
        out_shape=jax.ShapeDtypeStruct((b_pad, d), jnp.float32),
        grid=grid,
        in_specs=[x_spec, seg_spec, const((b_pad, 1))],
        out_specs=const((b_pad, d)),
        scratch_shapes=[pltpu.VMEM((b_pad, d), jnp.float32)],
        compiler_params=_compiler_params(("arbitrary",)),
    )(x, seg_ids, inv_counts)

    a_g, c_g = pl.pallas_call(
        functools.partial(_gn_var_kernel, n),
        out_shape=(jax.ShapeDtypeStruct((b_pad, d), jnp.float32),
                   jax.ShapeDtypeStruct((b_pad, d), jnp.float32)),
        grid=grid,
        in_specs=[x_spec, seg_spec, const((b_pad, d)), const((b_pad, 1)),
                  const((1, d)), const((1, d)), const((1, d))],
        out_specs=(const((b_pad, d)), const((b_pad, d))),
        scratch_shapes=[pltpu.VMEM((b_pad, d), jnp.float32)],
        compiler_params=_compiler_params(("arbitrary",)),
    )(x, seg_ids, mean_g, inv_counts, weight, mean_scale, bias)

    return pl.pallas_call(
        _gn_apply_kernel,
        out_shape=jax.ShapeDtypeStruct((n, d), x.dtype),
        grid=grid,
        in_specs=[x_spec, seg_spec, const((b_pad, d)), const((b_pad, d))],
        out_specs=x_spec,
        compiler_params=_compiler_params(("parallel",)),
    )(x, seg_ids, a_g, c_g)


# ----------------------------------------------------------------------------
# LayerNorm kernel (row-tiled, fully parallel)
# ----------------------------------------------------------------------------

def _layernorm_kernel(x_ref, w_ref, b_ref, o_ref):
    x = x_ref[...].astype(jnp.float32)
    mean = jnp.mean(x, axis=-1, keepdims=True)
    xc = x - mean
    var = jnp.mean(xc * xc, axis=-1, keepdims=True)
    y = xc * lax.rsqrt(var + 1e-5)
    o_ref[...] = (y * w_ref[...] + b_ref[...]).astype(o_ref.dtype)


def layernorm_forward(x, weight, bias):
    n, d = x.shape
    tile_n = _choose_row_tile(n)
    grid = (pl.cdiv(n, tile_n),)
    x_spec = pl.BlockSpec((tile_n, d), lambda i: (i, 0))
    w_spec = pl.BlockSpec((1, d), lambda i: (0, 0))
    return pl.pallas_call(
        _layernorm_kernel,
        out_shape=jax.ShapeDtypeStruct((n, d), x.dtype),
        grid=grid,
        in_specs=[x_spec, w_spec, w_spec],
        out_specs=x_spec,
        compiler_params=_compiler_params(("parallel",)),
    )(x, weight, bias)


# ----------------------------------------------------------------------------
# BatchNorm1d kernels (row-tiled sum / sum-of-squares accumulation + apply)
# ----------------------------------------------------------------------------

def _bn_stats_kernel(n_rows, x_ref, w_ref, b_ref, a_ref, c_ref, s_acc, sq_acc):
    i = pl.program_id(0)
    nt = pl.num_programs(0)

    @pl.when(i == 0)
    def _():
        s_acc[...] = jnp.zeros_like(s_acc)
        sq_acc[...] = jnp.zeros_like(sq_acc)

    tile_n = x_ref.shape[0]
    row = lax.broadcasted_iota(jnp.int32, (tile_n, 1), 0) + i * tile_n
    x = jnp.where(row < n_rows, x_ref[...].astype(jnp.float32), 0.0)
    s_acc[...] += jnp.sum(x, axis=0, keepdims=True)
    sq_acc[...] += jnp.sum(x * x, axis=0, keepdims=True)

    @pl.when(i == nt - 1)
    def _():
        inv_n = jnp.float32(1.0 / n_rows)
        mean = s_acc[...] * inv_n
        var = jnp.maximum(sq_acc[...] * inv_n - mean * mean, 0.0)  # biased var
        a = w_ref[...] * lax.rsqrt(var + 1e-5)
        a_ref[...] = a
        c_ref[...] = b_ref[...] - mean * a


def _affine_kernel(x_ref, a_ref, c_ref, o_ref):
    o_ref[...] = (x_ref[...].astype(jnp.float32) * a_ref[...]
                  + c_ref[...]).astype(o_ref.dtype)


def batchnorm_forward(x, weight, bias):
    n, d = x.shape
    tile_n = _choose_row_tile(n)
    grid = (pl.cdiv(n, tile_n),)
    x_spec = pl.BlockSpec((tile_n, d), lambda i: (i, 0))
    w_spec = pl.BlockSpec((1, d), lambda i: (0, 0))

    a, c = pl.pallas_call(
        functools.partial(_bn_stats_kernel, n),
        out_shape=(jax.ShapeDtypeStruct((1, d), jnp.float32),
                   jax.ShapeDtypeStruct((1, d), jnp.float32)),
        grid=grid,
        in_specs=[x_spec, w_spec, w_spec],
        out_specs=(w_spec, w_spec),
        scratch_shapes=[pltpu.VMEM((1, d), jnp.float32),
                        pltpu.VMEM((1, d), jnp.float32)],
        compiler_params=_compiler_params(("arbitrary",)),
    )(x, weight, bias)

    return pl.pallas_call(
        _affine_kernel,
        out_shape=jax.ShapeDtypeStruct((n, d), x.dtype),
        grid=grid,
        in_specs=[x_spec, w_spec, w_spec],
        out_specs=x_spec,
        compiler_params=_compiler_params(("parallel",)),
    )(x, a, c)


# ----------------------------------------------------------------------------
# Module wrapper
# ----------------------------------------------------------------------------

class Graph:
    def __init__(self, batch_num_nodes):
        self.batch_num_nodes = batch_num_nodes


class NormLayerPallas:
    def __init__(self, hidden_dim, norm_type):
        self.hidden_dim = hidden_dim
        self.norm_type = norm_type
        d = hidden_dim
        self.weight = jnp.ones((1, d), jnp.float32)
        self.bias = jnp.zeros((1, d), jnp.float32)
        if norm_type == 'graphnorm':
            self.mean_scale = jnp.ones((1, d), jnp.float32)
        elif norm_type not in ('batchnorm', 'layernorm'):
            raise NotImplementedError

    def __call__(self, graph, x):
        n, d = x.shape
        if self.norm_type == 'layernorm':
            return layernorm_forward(x, self.weight, self.bias)
        if self.norm_type == 'batchnorm':
            return batchnorm_forward(x, self.weight, self.bias)

        # graphnorm: only O(N) segment ids + O(B) inverse counts go to the device
        counts = np.asarray([int(c) for c in graph.batch_num_nodes], dtype=np.int64)
        b = counts.shape[0]
        assert int(counts.sum()) == n
        b_pad = max(8, int(np.ceil(b / 8)) * 8)
        seg_np = np.repeat(np.arange(b, dtype=np.int32), counts).reshape(n, 1)
        inv_np = np.zeros((b_pad, 1), np.float32)
        inv_np[:b, 0] = 1.0 / counts.astype(np.float32)
        seg_ids = jnp.asarray(seg_np)
        inv_counts = jnp.asarray(inv_np)
        return graphnorm_forward(x, seg_ids, inv_counts,
                                 self.weight, self.mean_scale, self.bias)


# ----------------------------------------------------------------------------
# NumPy references (correctness checks)
# ----------------------------------------------------------------------------

def graphnorm_ref(x, counts, weight, mean_scale, bias):
    counts = np.asarray(counts)
    b = len(counts)
    seg = np.repeat(np.arange(b), counts)
    x = np.asarray(x, np.float32)
    mean = np.zeros((b, x.shape[1]), np.float32)
    np.add.at(mean, seg, x)
    mean = mean / counts[:, None]
    sub = x - mean[seg] * np.asarray(mean_scale)
    var = np.zeros((b, x.shape[1]), np.float32)
    np.add.at(var, seg, sub ** 2)
    std = np.sqrt(var / counts[:, None] + 1e-6)
    return np.asarray(weight) * sub / std[seg] + np.asarray(bias)


# ----------------------------------------------------------------------------

if __name__ == "__main__":
    key = jax.random.PRNGKey(0)
    hidden_dim = 32
    batch_num_nodes = [7, 5, 8]          # 3 graphs, 20 nodes total
    n_nodes = sum(batch_num_nodes)

    x = jax.random.normal(key, (n_nodes, hidden_dim), dtype=jnp.float32)
    graph = Graph(batch_num_nodes)
    xnp = np.asarray(x)

    # graphnorm (the custom hot path of this module)
    gn = NormLayerPallas(hidden_dim, 'graphnorm')
    y_gn = gn(graph, x)
    jax.block_until_ready(y_gn)
    y_ref = graphnorm_ref(xnp, batch_num_nodes, gn.weight, gn.mean_scale, gn.bias)
    np.testing.assert_allclose(np.asarray(y_gn), y_ref, rtol=1e-4, atol=1e-4)

    # layernorm
    ln = NormLayerPallas(hidden_dim, 'layernorm')
    y_ln = ln(graph, x)
    jax.block_until_ready(y_ln)
    mu = xnp.mean(-1, keepdims=True)
    var = ((xnp - mu) ** 2).mean(-1, keepdims=True)
    np.testing.assert_allclose(np.asarray(y_ln), (xnp - mu) / np.sqrt(var + 1e-5),
                               rtol=1e-4, atol=1e-4)

    # batchnorm (training-mode batch statistics)
    bn = NormLayerPallas(hidden_dim, 'batchnorm')
    y_bn = bn(graph, x)
    jax.block_until_ready(y_bn)
    mu = xnp.mean(0, keepdims=True)
    var = ((xnp - mu) ** 2).mean(0, keepdims=True)
    np.testing.assert_allclose(np.asarray(y_bn), (xnp - mu) / np.sqrt(var + 1e-5),
                               rtol=1e-4, atol=2e-4)

    print("KERNEL_OK")
</pallas_src>

<mosaic_0001>
module attributes {stable_mosaic.version = 11 : i64} {
  func.func @_gn_mean_kernel(%arg0: i32, %arg1: memref<20x32xf32, #tpu.memory_space<vmem>>, %arg2: memref<20x1xi32, #tpu.memory_space<vmem>>, %arg3: memref<8x1xf32, #tpu.memory_space<vmem>>, %arg4: memref<8x32xf32, #tpu.memory_space<vmem>>, %arg5: memref<8x32xf32, #tpu.memory_space<vmem>>) attributes {dimension_semantics = [#tpu.dimension_semantics<arbitrary>], iteration_bounds = array<i64: 1>, scalar_prefetch = 0 : i64, scratch_operands = 1 : i64, tpu.core_type = #tpu.core_type<tc>, window_params = [{transform_indices = @transform_0, window_bounds = array<i64: 20, 32>}, {transform_indices = @transform_1, window_bounds = array<i64: 20, 1>}, {pipeline_mode = #tpu.pipeline_mode<synchronous>, transform_indices = @transform_2, window_bounds = array<i64: 8, 1>}, {pipeline_mode = #tpu.pipeline_mode<synchronous>, transform_indices = @transform_3, window_bounds = array<i64: 8, 32>}]} {
    %c0_i32 = arith.constant 0 : i32
    %0 = arith.cmpi eq, %arg0, %c0_i32 : i32
    %1 = arith.extui %0 : i1 to i32
    %c0_i32_0 = arith.constant 0 : i32
    %2 = arith.cmpi ne, %1, %c0_i32_0 : i32
    scf.if %2 {
      %cst_12 = arith.constant 0.000000e+00 : f32
      %29 = vector.broadcast %cst_12 : f32 to vector<8x32xf32>
      %c0_13 = arith.constant 0 : index
      %c0_14 = arith.constant 0 : index
      %30 = vector.load %arg5[%c0_13, %c0_14] : memref<8x32xf32, #tpu.memory_space<vmem>>, vector<8x32xf32>
      tpu.vector_store %arg5[%c0_13, %c0_14], %29 {strides = array<i32>} : memref<8x32xf32, #tpu.memory_space<vmem>>, vector<8x32xf32>,
    } else {
    }
    %3 = tpu.iota {dimensions = array<i32: 0>} : vector<20x1xi32>
    %c20_i32 = arith.constant 20 : i32
    %4 = arith.muli %arg0, %c20_i32 : i32
    %5 = vector.broadcast %4 : i32 to vector<20x1xi32>
    %6 = arith.addi %3, %5 : vector<20x1xi32>
    %c20_i32_1 = arith.constant 20 : i32
    %7 = vector.broadcast %c20_i32_1 : i32 to vector<20x1xi32>
    %8 = arith.cmpi slt, %6, %7 : vector<20x1xi32>
    %c0 = arith.constant 0 : index
    %c0_2 = arith.constant 0 : index
    %9 = vector.load %arg1[%c0, %c0_2] : memref<20x32xf32, #tpu.memory_space<vmem>>, vector<20x32xf32>
    %cst = arith.constant 0.000000e+00 : f32
    %10 = vector.shape_cast %8 : vector<20x1xi1> to vector<20x1xi1>
    %11 = vector.broadcast %10 : vector<20x1xi1> to vector<20x32xi1>
    %12 = vector.broadcast %cst : f32 to vector<20x32xf32>
    %13 = arith.select %11, %9, %12 : vector<20x32xi1>, vector<20x32xf32>
    %14 = tpu.iota {dimensions = array<i32: 1>} : vector<20x8xi32>
    %c0_3 = arith.constant 0 : index
    %c0_4 = arith.constant 0 : index
    %15 = vector.load %arg2[%c0_3, %c0_4] : memref<20x1xi32, #tpu.memory_space<vmem>>, vector<20x1xi32>
    %16 = vector.broadcast %15 : vector<20x1xi32> to vector<20x8xi32>
    %17 = arith.cmpi eq, %16, %14 : vector<20x8xi32>
    %18 = vector.broadcast %8 : vector<20x1xi1> to vector<20x8xi1>
    %19 = arith.andi %18, %17 : vector<20x8xi1>
    %20 = arith.extui %19 : vector<20x8xi1> to vector<20x8xi32>
    %21 = arith.sitofp %20 : vector<20x8xi32> to vector<20x8xf32>
    %c0_5 = arith.constant 0 : index
    %c0_6 = arith.constant 0 : index
    %22 = vector.load %arg5[%c0_5, %c0_6] : memref<8x32xf32, #tpu.memory_space<vmem>>, vector<8x32xf32>
    %cst_7 = arith.constant dense<0.000000e+00> : vector<8x32xf32>
    %23 = tpu.matmul %21, %13, %cst_7 {dimension_numbers = #tpu.dot_dimension_numbers<[0], [0], [1], [1], [0, 1, 1, 1], [], []>} : vector<20x8xf32>, vector<20x32xf32>, vector<8x32xf32> -> vector<8x32xf32>
    %24 = arith.addf %22, %23 : vector<8x32xf32>
    %c0_8 = arith.constant 0 : index
    %c0_9 = arith.constant 0 : index
    %25 = vector.load %arg5[%c0_8, %c0_9] : memref<8x32xf32, #tpu.memory_space<vmem>>, vector<8x32xf32>
    tpu.vector_store %arg5[%c0_8, %c0_9], %24 {strides = array<i32>} : memref<8x32xf32, #tpu.memory_space<vmem>>, vector<8x32xf32>,
    %c0_i32_10 = arith.constant 0 : i32
    %26 = arith.cmpi eq, %arg0, %c0_i32_10 : i32
    %27 = arith.extui %26 : i1 to i32
    %c0_i32_11 = arith.constant 0 : i32
    %28 = arith.cmpi ne, %27, %c0_i32_11 : i32
    scf.if %28 {
      %c0_12 = arith.constant 0 : index
      %c0_13 = arith.constant 0 : index
      %29 = vector.load %arg5[%c0_12, %c0_13] : memref<8x32xf32, #tpu.memory_space<vmem>>, vector<8x32xf32>
      %c0_14 = arith.constant 0 : index
      %c0_15 = arith.constant 0 : index
      %30 = vector.load %arg3[%c0_14, %c0_15] : memref<8x1xf32, #tpu.memory_space<vmem>>, vector<8x1xf32>
      %31 = vector.broadcast %30 : vector<8x1xf32> to vector<8x32xf32>
      %32 = arith.mulf %29, %31 : vector<8x32xf32>
      %c0_16 = arith.constant 0 : index
      %c0_17 = arith.constant 0 : index
      %33 = vector.load %arg4[%c0_16, %c0_17] : memref<8x32xf32, #tpu.memory_space<vmem>>, vector<8x32xf32>
      tpu.vector_store %arg4[%c0_16, %c0_17], %32 {strides = array<i32>} : memref<8x32xf32, #tpu.memory_space<vmem>>, vector<8x32xf32>,
    } else {
    }
    return
  }
  func.func @transform_0(%arg0: i32) -> (i32, i32) {
    %c0_i32 = arith.constant 0 : i32
    %c0_i32_0 = arith.constant 0 : i32
    return %arg0, %c0_i32 : i32, i32
  }
  func.func @transform_1(%arg0: i32) -> (i32, i32) {
    %c0_i32 = arith.constant 0 : i32
    %c0_i32_0 = arith.constant 0 : i32
    return %arg0, %c0_i32 : i32, i32
  }
  func.func @transform_2(%arg0: i32) -> (i32, i32) {
    %c0_i32 = arith.constant 0 : i32
    %c0_i32_0 = arith.constant 0 : i32
    %c0_i32_1 = arith.constant 0 : i32
    return %c0_i32, %c0_i32_0 : i32, i32
  }
  func.func @transform_3(%arg0: i32) -> (i32, i32) {
    %c0_i32 = arith.constant 0 : i32
    %c0_i32_0 = arith.constant 0 : i32
    %c0_i32_1 = arith.constant 0 : i32
    return %c0_i32, %c0_i32_0 : i32, i32
  }
}

</mosaic_0001>

<llo_original>
// kernel: tpu_custom_call.1
$region0: #{tpu_custom_call.1}
  #allocation0 [shape = 'u32[]', space=smem, size = 0x4, offset = 0x4, fixed_abs, tag = 'smem constant byte address 0x4 - core index']
  #allocation1 [shape = 'u32[144,128]{1,0:T(1,128)}', space=vmem, size = 0x12000, scoped, tag = 'internal scratch']
  #allocation2 [shape = 'f32[8,32]{1,0:T(8,128)}', space=vmem, size = 0x1000, scoped, tag = 'scratch operand']
  %s0 = inlined_call_operand.vmem [shape: f32[20,32], index: 0, kind: input, shape index: {}]
  %s1 = inlined_call_operand.vmem [shape: s32[20,1], index: 1, kind: input, shape index: {}]
  %s2 = inlined_call_operand.vmem [shape: f32[8,1], index: 2, kind: input, shape index: {}]
  %s3 = inlined_call_operand.hbm [shape: f32[8,32], index: 3, kind: output, shape index: {}]
  %s4 = sld [smem:[#allocation0]]
  $region30: #{tpu_custom_call.1} parent=0
    _
  %s6 = ssub.s32 1, %s4
  %s7 = scalar_select 0, %s6, %s4
  $region1: #{tpu_custom_call.1} parent=0
    #allocation3 [shape = 'u8[4096]{0}', space=vmem, size = 0x1000, scoped, tag = 'output window, operand 0, single buffered']
    #allocation4 [shape = 's32[1]{0}', space=sflag, size = 0x4, scoped, tag = 'scoped memory for tpu_custom_call.1']
    %8 = vsyncpa [#allocation4], 0
    // Predicated region
    $region2: #{tpu_custom_call.1} parent=1 // pred_check
      _
    $region3: #{tpu_custom_call.1} parent=1 // pred_check_branch
      %10 = sbr.rel (0) target = $region5
    $region4: #{tpu_custom_call.1} parent=1 // pred_region
      _
    $region5: #{tpu_custom_call.1} parent=1 // pred_fallthru
      _
    // Predicated region
    $region6: #{tpu_custom_call.1} parent=1 // pred_check
      _
    $region7: #{tpu_custom_call.1} parent=1 // pred_check_branch
      %12 = sbr.rel (0) target = $region9
    $region8: #{tpu_custom_call.1} parent=1 // pred_region
      _
    $region9: #{tpu_custom_call.1} parent=1 // pred_fallthru
      _
    // Predicated region
    $region10: #{tpu_custom_call.1} parent=1 // pred_check
      _
    $region11: #{tpu_custom_call.1} parent=1 // pred_check_branch
      %14 = sbr.rel (0) target = $region13
    $region12: #{tpu_custom_call.1} parent=1 // pred_region
      _
    $region13: #{tpu_custom_call.1} parent=1 // pred_fallthru
      _
    %p15 = scmp.eq.s32.totalorder 0, 0
    // Predicated region
    $region14: #{tpu_custom_call.1} parent=1 // pred_check
      %p16 = pneg %p15
    $region15: #{tpu_custom_call.1} parent=1 // pred_check_branch
      %18 = sbr.rel (%p16) target = $region17
    $region16: #{tpu_custom_call.1} parent=1 // pred_region
      %vm19 = vcmask 261120
      %20 = vst.msk [vmem:[#allocation2] sm:$0xff] %vm19, 0.0
    $region17: #{tpu_custom_call.1} parent=1 // pred_fallthru
      _
    %v21 = vlaneseq
    %v22 = vshrl.u32 %v21, 7
    %v23 = vadd.s32 %v22, 8
    %v24 = vadd.s32 %v22, 16
    %s25 = smul.u32 0, 20
    %v26 = vstv %s25
    %v27 = vadd.s32 %v22, %v26
    %v28 = vadd.s32 %v23, %v26
    %v29 = vadd.s32 %v24, %v26
    %vm30 = vcmp.lt.s32.totalorder %v27, 20
    %vm31 = vcmp.lt.s32.totalorder %v28, 20
    %vm32 = vcmp.lt.s32.totalorder %v29, 20
    %v33 = vld [vmem:[%s0] sm:$0xff]
    %v34 = vld [vmem:[%s0 + $0x8] sm:$0xff]
    %v35 = vld [vmem:[%s0 + $0x10] sm:$0xf]
    %v36 = vsel %vm30, 1, 0
    %v37 = vsel %vm31, 1, 0
    %v38 = vsel %vm32, 1, 0
    %vm39 = vcmp.eq.s32.totalorder %v36, 1
    %vm40 = vcmp.eq.s32.totalorder %v37, 1
    %vm41 = vcmp.eq.s32.totalorder %v38, 1
    %v42 = vsel %vm39, %v33, 0.0
    %v43 = vsel %vm40, %v34, 0.0
    %v44 = vsel %vm41, %v35, 0.0
    %v45 = vlaneseq
    %v46 = vand.u32 %v45, 127
    %v47 = vld [vmem:[%s1] sm:$0xff]
    %v48 = vld [vmem:[%s1 + $0x8] sm:$0xff]
    %v49 = vld [vmem:[%s1 + $0x10] sm:$0xf]
    %50 = vset.pattern.permute.xlu0 0
    %51 = vperm.xlu0 %50, %v47
    %v52 = vpop.permute.xlu0 %51
    %53 = vset.pattern.permute.xlu0 0
    %54 = vperm.xlu0 %53, %v48
    %v55 = vpop.permute.xlu0 %54
    %56 = vset.pattern.permute.xlu0 0
    %57 = vperm.xlu0 %56, %v49
    %v58 = vpop.permute.xlu0 %57
    %vm59 = vcmp.eq.s32.totalorder %v52, %v46
    %vm60 = vcmp.eq.s32.totalorder %v55, %v46
    %vm61 = vcmp.eq.s32.totalorder %v58, %v46
    %vm62 = vmand %vm39, %vm59
    %vm63 = vmand %vm40, %vm60
    %vm64 = vmand %vm41, %vm61
    %v65 = vsel %vm62, 1, 0
    %v66 = vsel %vm63, 1, 0
    %v67 = vsel %vm64, 1, 0
    %v68 = vcvt.s32.f32 %v65
    %v69 = vcvt.s32.f32 %v66
    %v70 = vcvt.s32.f32 %v67
    %v71 = vld [vmem:[#allocation2] sm:$0xff]
    %72 = vxpose.xlu0.b32.start [1/16] %v68, 128
    %73 = vxpose.xlu0.b32.cont [2/16] %v69, 128
    %74 = vxpose.xlu0.b32.cont [3/16] %v70, 128
    %75 = vxpose.xlu0.b32.cont [4/16] 0.0, 128
    %76 = vxpose.xlu0.b32.cont [5/16] 0.0, 128
    %77 = vxpose.xlu0.b32.cont [6/16] 0.0, 128
    %78 = vxpose.xlu0.b32.cont [7/16] 0.0, 128
    %79 = vxpose.xlu0.b32.cont [8/16] 0.0, 128
    %80 = vxpose.xlu0.b32.cont [9/16] 0.0, 128
    %81 = vxpose.xlu0.b32.cont [10/16] 0.0, 128
    %82 = vxpose.xlu0.b32.cont [11/16] 0.0, 128
    %83 = vxpose.xlu0.b32.cont [12/16] 0.0, 128
    %84 = vxpose.xlu0.b32.cont [13/16] 0.0, 128
    %85 = vxpose.xlu0.b32.cont [14/16] 0.0, 128
    %86 = vxpose.xlu0.b32.cont [15/16] 0.0, 128
    %87 = vxpose.xlu0.b32.end [16/16] 0.0, 128
    %v88 = vpop.trf.xlu0
    %v89 = vpop.trf.xlu0
    %v90 = vpop.trf.xlu0
    %v91 = vpop.trf.xlu0
    %v92 = vpop.trf.xlu0
    %v93 = vpop.trf.xlu0
    %v94 = vpop.trf.xlu0
    %v95 = vpop.trf.xlu0
    %v96 = vpop.trf.xlu0
    %v97 = vpop.trf.xlu0
    %v98 = vpop.trf.xlu0
    %v99 = vpop.trf.xlu0
    %v100 = vpop.trf.xlu0
    %v101 = vpop.trf.xlu0
    %v102 = vpop.trf.xlu0
    %v103 = vpop.trf.xlu0
    %vm104 = vcmask 162816
    %v106 = vsel %vm104, %v88, 0
    %vm108 = vcmask 1043456
    %v110 = vsel %vm108, %v44, 0
    %112 = vmatprep.subr.mxu0 0.0
    %113 = vmatpush1.msra.mxu0 0.0
    %114 = vmatprep.subr.mxu0 0.0
    %115 = vmatpush1.msra.mxu0 0.0
    %116 = vmatprep.subr.mxu0 0.0
    %117 = vmatpush1.msra.mxu0 0.0
    %118 = vmatprep.subr.mxu0 0.0
    %119 = vmatpush1.msra.mxu0 0.0
    %120 = vmatprep.subr.mxu0 0.0
    %121 = vmatpush1.msra.mxu0 0.0
    %122 = vmatprep.subr.mxu0 0.0
    %123 = vmatpush1.msra.mxu0 0.0
    %124 = vmatprep.subr.mxu0 0.0
    %125 = vmatpush1.msra.mxu0 0.0
    %126 = vmatprep.subr.mxu0 0.0
    %127 = vmatpush1.msra.mxu0 0.0
    %128 = vmatprep.subr.mxu0 0.0
    %129 = vmatpush1.msra.mxu0 0.0
    %130 = vmatprep.subr.mxu0 0.0
    %131 = vmatpush1.msra.mxu0 0.0
    %132 = vmatprep.subr.mxu0 0.0
    %133 = vmatpush1.msra.mxu0 0.0
    %134 = vmatprep.subr.mxu0 0.0
    %135 = vmatpush1.msra.mxu0 0.0
    %136 = vmatprep.subr.mxu0 0.0
    %137 = vmatpush1.msra.mxu0 0.0
    %138 = vmatprep.subr.mxu0 0.0
    %139 = vmatpush1.msra.mxu0 %v110
    %140 = vmatprep.subr.mxu0 0.0
    %141 = vmatpush1.msra.mxu0 %v43
    %142 = vmatprep.subr.mxu0 0.0
    %143 = vmatpush1.msra.mxu0 %v42
    %144 = vmatprep.subr.mxu0 0.0
    %145 = vmatpush2.msra.mxu0 0.0
    %146 = vmatprep.subr.mxu0 0.0
    %147 = vmatpush2.msra.mxu0 0.0
    %148 = vmatprep.subr.mxu0 0.0
    %149 = vmatpush2.msra.mxu0 0.0
    %150 = vmatprep.subr.mxu0 0.0
    %151 = vmatpush2.msra.mxu0 0.0
    %152 = vmatprep.subr.mxu0 0.0
    %153 = vmatpush2.msra.mxu0 0.0
    %154 = vmatprep.subr.mxu0 0.0
    %155 = vmatpush2.msra.mxu0 0.0
    %156 = vmatprep.subr.mxu0 0.0
    %157 = vmatpush2.msra.mxu0 0.0
    %158 = vmatprep.subr.mxu0 0.0
    %159 = vmatpush2.msra.mxu0 0.0
    %160 = vmatprep.subr.mxu0 0.0
    %161 = vmatpush2.msra.mxu0 0.0
    %162 = vmatprep.subr.mxu0 0.0
    %163 = vmatpush2.msra.mxu0 0.0
    %164 = vmatprep.subr.mxu0 0.0
    %165 = vmatpush2.msra.mxu0 0.0
    %166 = vmatprep.subr.mxu0 0.0
    %167 = vmatpush2.msra.mxu0 0.0
    %168 = vmatprep.subr.mxu0 0.0
    %169 = vmatpush2.msra.mxu0 0.0
    %170 = vmatprep.subr.mxu0 0.0
    %171 = vmatpush2.msra.mxu0 0.0
    %172 = vmatprep.subr.mxu0 0.0
    %173 = vmatpush2.msra.mxu0 0.0
    %174 = vmatprep.subr.mxu0 0.0
    %175 = vmatpush2.msra.mxu0 0.0
    %176 = vmatprep.mubr.f32.mxu0 0.0
    %177 = vmatmul.mubr.f32.gmra.mxu0 %v106
    %v178 = vpop.f32.mrf.mxu0
    %v179 = vadd.f32 0.0, %v178
    %v180 = vpop.f32.mrf.mxu0
    %181 = vdwg.mxu0
    %v182 = vadd.f32 %v71, %v179
    %vm183 = vcmask 261120
    %184 = vst.msk [vmem:[#allocation2] sm:$0xff] %vm183, %v182
    // Predicated region
    $region18: #{tpu_custom_call.1} parent=1 // pred_check
      %p185 = pneg %p15
    $region19: #{tpu_custom_call.1} parent=1 // pred_check_branch
      %187 = sbr.rel (%p185) target = $region21
    $region20: #{tpu_custom_call.1} parent=1 // pred_region
      %v188 = vld [vmem:[#allocation2] sm:$0xff]
      %v189 = vld [vmem:[%s2] sm:$0xff]
      %191 = vset.pattern.permute.xlu0 0
      %192 = vperm.xlu0 %191, %v189
      %v193 = vpop.permute.xlu0 %192
      %v195 = vmul.f32 %v188, %v193
      %196 = vst.msk [vmem:[#allocation3] sm:$0xff] %vm183, %v195
    $region21: #{tpu_custom_call.1} parent=1 // pred_fallthru
      _
    // Predicated region
    $region22: #{tpu_custom_call.1} parent=1 // pred_check
      _
    $region23: #{tpu_custom_call.1} parent=1 // pred_check_branch
      %198 = sbr.rel (0) target = $region25
    $region24: #{tpu_custom_call.1} parent=1 // pred_region
      %s200 = ssub.s32 128, 128
      %201 = vsyncadd [#allocation4], %s200
      %s203 = sshll.u32 [#allocation3], 4
      %s204 = int_to_ptr.vmem [resolvable:$true] %s203
      %206 = dma.vmem_to_hbm [thread:$0]  %s204, 128, %s3, [#allocation4]
    $region25: #{tpu_custom_call.1} parent=1 // pred_fallthru
      _
    // Predicated region
    $region26: #{tpu_custom_call.1} parent=1 // pred_check
      _
    $region27: #{tpu_custom_call.1} parent=1 // pred_check_branch
      %208 = sbr.rel (0) target = $region29
    $region28: #{tpu_custom_call.1} parent=1 // pred_region
      %209 = dma.done [#allocation4], 128
    $region29: #{tpu_custom_call.1} parent=1 // pred_fallthru
      _
    %210 = vsyncpa [#allocation4], 1

</llo_original>
